<compile_context>
chip_gen: v6e
topology: v6e:2x2x1
jax: 0.10.0
libtpu: 0.0.40
codegen_flags: <defaults>
</compile_context>

<pallas_src>
import math
import functools

import jax
import jax.numpy as jnp
from jax import lax
from jax.experimental import pallas as pl
from jax.experimental.pallas import tpu as pltpu

_INV_SQRT2 = 1.0 / math.sqrt(2.0)
_LANE = 128
_BF16_SUBLANE = 16     # bf16 vregs pack 16 sublanes


def _round_up(x: int, n: int) -> int:
    return (x + n - 1) // n * n


def _adapter_kernel(x_ref, wd_ref, bd_ref, wu_ref, bu_ref, o_ref, *,
                    approximate_gelu: bool):
    # Cast to the MXU dtype inside the kernel (no pre-cast copy in HBM).
    x = x_ref[...].astype(wd_ref.dtype)

    # down projection: (tm, dim) @ (dim, mid_p) -> (tm, mid_p), f32 accumulate
    h = jnp.dot(x, wd_ref[...], preferred_element_type=jnp.float32)
    h = h + bd_ref[...]                       # (1, mid_p) broadcast, f32

    if approximate_gelu:
        # tanh GELU runs on the EUP (otherwise-idle VLIW slot); opt-in for the
        # compute-bound (large mid_dim) regime.
        h = jax.nn.gelu(h, approximate=True)
    else:
        # exact erf GELU in f32, matching torch.nn.GELU() default.
        h = 0.5 * h * (1.0 + lax.erf(h * _INV_SQRT2))

    # up projection: (tm, mid_p) @ (mid_p, dim) -> (tm, dim), f32 accumulate
    y = jnp.dot(h.astype(wu_ref.dtype), wu_ref[...],
                preferred_element_type=jnp.float32)
    y = y + bu_ref[...]                       # (1, dim) broadcast, f32

    o_ref[...] = y.astype(o_ref.dtype)


def prepare_adapter_params(w_down, b_down, w_up, b_up, *, use_bf16=True):
    """One-time (construction-time) weight prep, hoisted out of the forward.

    Weights are stored as (in_features, out_features) (PyTorch weights
    pre-transposed).  mid_dim is zero-padded to a multiple of 128 so both
    matmuls are lane-dense; padding is numerically exact.  Weights are cast to
    bfloat16 for the MXU; biases stay float32.
    """
    dim, mid_dim = w_down.shape
    assert w_up.shape == (mid_dim, dim)
    mid_p = _round_up(mid_dim, _LANE)
    w_dtype = jnp.bfloat16 if use_bf16 else w_down.dtype

    wd_p = jnp.pad(w_down, ((0, 0), (0, mid_p - mid_dim))).astype(w_dtype)
    wu_p = jnp.pad(w_up, ((0, mid_p - mid_dim), (0, 0))).astype(w_dtype)
    bd_p = jnp.pad(b_down, (0, mid_p - mid_dim)).astype(jnp.float32).reshape(1, mid_p)
    bu_p = b_up.astype(jnp.float32).reshape(1, dim)
    return wd_p, bd_p, wu_p, bu_p


@functools.partial(jax.jit, static_argnames=("max_tm", "approximate_gelu"))
def adapter_eraser_forward(hidden_states, wd_p, bd_p, wu_p, bu_p, *,
                           max_tm=512, approximate_gelu=False):
    """hidden_states: (..., dim).  Weights come from prepare_adapter_params()."""
    orig_shape = hidden_states.shape
    out_dtype = hidden_states.dtype
    dim = orig_shape[-1]
    mid_p = wd_p.shape[1]
    if wd_p.shape[0] != dim or wu_p.shape != (mid_p, dim):
        raise ValueError("adapter weight shapes do not match hidden_states")

    x2d = hidden_states.reshape(-1, dim)
    m = x2d.shape[0]

    # --- row tiling -----------------------------------------------------------
    if m <= 2 * _BF16_SUBLANE:
        # Tiny input: one full-extent block (block dim == array dim is always
        # a legal layout regardless of the (8,128) rule).
        tm = m
        grid_m = 1
    else:
        # >= 2 grid steps when possible (keeps both v7x TensorCores busy);
        # tm a multiple of 16 (bf16 sublane packing), capped at max_tm.
        tm = min(max_tm, _round_up(pl.cdiv(m, 2), _BF16_SUBLANE))
        grid_m = pl.cdiv(m, tm)
        # Prefer an even step count for large m (v7x megacore balance).
        if grid_m >= 3 and grid_m % 2 == 1:
            tm_even = _round_up(pl.cdiv(m, grid_m + 1), _BF16_SUBLANE)
            if tm_even >= 256:
                tm, grid_m = tm_even, pl.cdiv(m, tm_even)

    # --- VMEM budget (generation aware) ---------------------------------------
    x_bytes = jnp.dtype(x2d.dtype).itemsize
    w_bytes = jnp.dtype(wd_p.dtype).itemsize
    o_bytes = jnp.dtype(out_dtype).itemsize
    try:
        vmem_cap = int(pltpu.get_tpu_info().vmem_capacity_bytes)
    except Exception:
        vmem_cap = 64 * 2 ** 20            # conservative (v7x-sized) fallback
    vmem_budget = int(0.82 * vmem_cap)     # leave headroom for compiler scratch

    def vmem_est(t):
        return (2 * t * dim * x_bytes              # x tiles (double-buffered)
                + 2 * t * dim * o_bytes            # out tiles (double-buffered)
                + 2 * dim * mid_p * w_bytes        # resident weights (single-buffered)
                + 2 * (mid_p + dim) * 4            # biases
                + t * (mid_p + dim) * 4            # f32 intermediates h / y
                + t * dim * w_bytes)               # in-kernel bf16 copy of x

    while vmem_est(tm) > vmem_budget and tm > 2 * _BF16_SUBLANE:
        tm = max(_BF16_SUBLANE, _round_up(tm // 2, _BF16_SUBLANE))
    grid_m = pl.cdiv(m, tm)
    # TODO(synk): if the resident bf16 weights alone exceed the VMEM budget
    # (dim >= ~4K with mid >= ~1K on v7x), add a K grid axis marked "arbitrary"
    # with an f32 accumulator scratch instead of shrinking tm further.

    vmem_limit = int(min(vmem_budget, max(2 * vmem_est(tm), 32 * 2 ** 20)))

    cost = pl.CostEstimate(
        flops=4 * m * dim * mid_p,                 # two matmuls, 2*M*K*N each
        transcendentals=m * mid_p,                 # GELU
        bytes_accessed=(m * dim * (x_bytes + o_bytes)
                        + 2 * dim * mid_p * w_bytes),
    )

    # Constant index_map => weights stay resident; single-buffer them.
    resident = pl.Buffered(1)
    kernel = functools.partial(_adapter_kernel, approximate_gelu=approximate_gelu)

    out = pl.pallas_call(
        kernel,
        out_shape=jax.ShapeDtypeStruct((m, dim), out_dtype),
        grid_spec=pltpu.PrefetchScalarGridSpec(
            num_scalar_prefetch=0,
            grid=(grid_m,),
            in_specs=[
                pl.BlockSpec((tm, dim), lambda i: (i, 0)),                             # x tile
                pl.BlockSpec((dim, mid_p), lambda i: (0, 0), pipeline_mode=resident),  # W_down
                pl.BlockSpec((1, mid_p), lambda i: (0, 0), pipeline_mode=resident),    # b_down
                pl.BlockSpec((mid_p, dim), lambda i: (0, 0), pipeline_mode=resident),  # W_up
                pl.BlockSpec((1, dim), lambda i: (0, 0), pipeline_mode=resident),      # b_up
            ],
            out_specs=pl.BlockSpec((tm, dim), lambda i: (i, 0)),
        ),
        compiler_params=pltpu.CompilerParams(
            dimension_semantics=("parallel",),
            vmem_limit_bytes=vmem_limit,
        ),
        cost_estimate=cost,
    )(x2d, wd_p, bd_p, wu_p, bu_p)

    return out.reshape(orig_shape)


def _reference_forward(x, w_down, b_down, w_up, b_up, approximate=False):
    h = x @ w_down + b_down
    if approximate:
        h = jax.nn.gelu(h, approximate=True)
    else:
        h = 0.5 * h * (1.0 + lax.erf(h * _INV_SQRT2))
    return h @ w_up + b_up


if __name__ == "__main__":
    # Small shapes consistent with the module: hidden_states (batch, seq, dim)
    batch, seq, dim, mid_dim = 2, 8, 32, 8

    key = jax.random.PRNGKey(0)
    k_x, k_wd, k_bd, k_wu, k_bu, k_x2, k_x3 = jax.random.split(key, 7)

    hidden_states = jax.random.normal(k_x, (batch, seq, dim), dtype=jnp.float32)

    # down = nn.Linear(dim, mid_dim): PyTorch-style uniform init, stored (in, out).
    bound_d = 1.0 / math.sqrt(dim)
    w_down = jax.random.uniform(k_wd, (dim, mid_dim), jnp.float32, -bound_d, bound_d)
    b_down = jax.random.uniform(k_bd, (mid_dim,), jnp.float32, -bound_d, bound_d)

    # up = zero_module(nn.Linear(mid_dim, dim)): all parameters zeroed.
    w_up = jnp.zeros((mid_dim, dim), jnp.float32)
    b_up = jnp.zeros((dim,), jnp.float32)

    # One-time weight prep (hoisted out of the per-forward path).
    params0 = prepare_adapter_params(w_down, b_down, w_up, b_up)

    # --- 1) module as initialized: zero-init up => output is exactly zero -----
    out = jax.block_until_ready(adapter_eraser_forward(hidden_states, *params0))
    assert out.shape == hidden_states.shape and out.dtype == hidden_states.dtype
    assert jnp.allclose(out, 0.0), "zero-initialized up projection must give 0"
    assert jnp.allclose(out, _reference_forward(hidden_states, w_down, b_down,
                                                w_up, b_up), atol=1e-5)

    # --- 2) non-zero up weights: exercise the second matmul (bf16 MXU path) ---
    bound_u = 1.0 / math.sqrt(mid_dim)
    w_up_nz = jax.random.uniform(k_wu, (mid_dim, dim), jnp.float32, -bound_u, bound_u)
    b_up_nz = jax.random.uniform(k_bu, (dim,), jnp.float32, -bound_u, bound_u)
    params_nz = prepare_adapter_params(w_down, b_down, w_up_nz, b_up_nz)
    out_nz = jax.block_until_ready(adapter_eraser_forward(hidden_states, *params_nz))
    ref_nz = _reference_forward(hidden_states, w_down, b_down, w_up_nz, b_up_nz)
    assert jnp.allclose(out_nz, ref_nz, atol=3e-2, rtol=3e-2), "bf16 MXU path mismatch"

    # --- 3) row count not a multiple of the sublane (single partial block) ----
    hidden_odd = jax.random.normal(k_x2, (2, 5, dim), dtype=jnp.float32)
    out_odd = jax.block_until_ready(adapter_eraser_forward(hidden_odd, *params_nz))
    ref_odd = _reference_forward(hidden_odd, w_down, b_down, w_up_nz, b_up_nz)
    assert out_odd.shape == hidden_odd.shape
    assert jnp.allclose(out_odd, ref_odd, atol=3e-2, rtol=3e-2)

    # --- 4) multi-step grid with a partial last block (max_tm=16 => 3 steps) --
    hidden_big = jax.random.normal(k_x3, (5, 8, dim), dtype=jnp.float32)
    out_big = jax.block_until_ready(
        adapter_eraser_forward(hidden_big, *params_nz, max_tm=16))
    ref_big = _reference_forward(hidden_big, w_down, b_down, w_up_nz, b_up_nz)
    assert jnp.allclose(out_big, ref_big, atol=3e-2, rtol=3e-2)

    # --- 5) lane-aligned fast path (dim % 128 == 0): no padding anywhere ------
    dim2, mid2 = 128, 64
    kk = jax.random.split(k_x3, 5)
    h2 = jax.random.normal(kk[0], (batch, seq, dim2), dtype=jnp.float32)
    wd2 = jax.random.uniform(kk[1], (dim2, mid2), jnp.float32, -1, 1) / math.sqrt(dim2)
    bd2 = jax.random.uniform(kk[2], (mid2,), jnp.float32, -1, 1) / math.sqrt(dim2)
    wu2 = jax.random.uniform(kk[3], (mid2, dim2), jnp.float32, -1, 1) / math.sqrt(mid2)
    bu2 = jax.random.uniform(kk[4], (dim2,), jnp.float32, -1, 1) / math.sqrt(mid2)
    p2 = prepare_adapter_params(wd2, bd2, wu2, bu2)
    out2 = jax.block_until_ready(adapter_eraser_forward(h2, *p2))
    ref2 = _reference_forward(h2, wd2, bd2, wu2, bu2)
    assert jnp.allclose(out2, ref2, atol=3e-2, rtol=3e-2)

    # --- 6) opt-in tanh-approx GELU path (EUP) ---------------------------------
    out_tanh = jax.block_until_ready(
        adapter_eraser_forward(h2, *p2, approximate_gelu=True))
    ref_tanh = _reference_forward(h2, wd2, bd2, wu2, bu2, approximate=True)
    assert jnp.allclose(out_tanh, ref_tanh, atol=3e-2, rtol=3e-2)

    print("KERNEL_OK")
</pallas_src>

<mosaic_0001>
module attributes {stable_mosaic.version = 11 : i64} {
  func.func @_adapter_kernel(%arg0: i32, %arg1: memref<16x32xf32, #tpu.memory_space<vmem>>, %arg2: memref<32x128xbf16, #tpu.memory_space<vmem>>, %arg3: memref<1x128xf32, #tpu.memory_space<vmem>>, %arg4: memref<128x32xbf16, #tpu.memory_space<vmem>>, %arg5: memref<1x32xf32, #tpu.memory_space<vmem>>, %arg6: memref<16x32xf32, #tpu.memory_space<vmem>>) attributes {dimension_semantics = [#tpu.dimension_semantics<parallel>], iteration_bounds = array<i64: 1>, scalar_prefetch = 0 : i64, scratch_operands = 0 : i64, tpu.core_type = #tpu.core_type<tc>, window_params = [{transform_indices = @transform_0, window_bounds = array<i64: 16, 32>}, {pipeline_mode = #tpu.pipeline_mode<synchronous>, transform_indices = @transform_1, window_bounds = array<i64: 32, 128>}, {pipeline_mode = #tpu.pipeline_mode<synchronous>, transform_indices = @transform_2, window_bounds = array<i64: 1, 128>}, {pipeline_mode = #tpu.pipeline_mode<synchronous>, transform_indices = @transform_3, window_bounds = array<i64: 128, 32>}, {pipeline_mode = #tpu.pipeline_mode<synchronous>, transform_indices = @transform_4, window_bounds = array<i64: 1, 32>}, {transform_indices = @transform_5, window_bounds = array<i64: 16, 32>}]} {
    %c0 = arith.constant 0 : index
    %c0_0 = arith.constant 0 : index
    %0 = vector.load %arg1[%c0, %c0_0] : memref<16x32xf32, #tpu.memory_space<vmem>>, vector<16x32xf32>
    %1 = arith.truncf %0 : vector<16x32xf32> to vector<16x32xbf16>
    %c0_1 = arith.constant 0 : index
    %c0_2 = arith.constant 0 : index
    %2 = vector.load %arg2[%c0_1, %c0_2] : memref<32x128xbf16, #tpu.memory_space<vmem>>, vector<32x128xbf16>
    %cst = arith.constant dense<0.000000e+00> : vector<16x128xf32>
    %3 = tpu.matmul %1, %2, %cst {dimension_numbers = #tpu.dot_dimension_numbers<[1], [0], [0], [1], [0, 0, 1, 1], [], []>} : vector<16x32xbf16>, vector<32x128xbf16>, vector<16x128xf32> -> vector<16x128xf32>
    %c0_3 = arith.constant 0 : index
    %c0_4 = arith.constant 0 : index
    %4 = vector.load %arg3[%c0_3, %c0_4] : memref<1x128xf32, #tpu.memory_space<vmem>>, vector<1x128xf32>
    %5 = vector.broadcast %4 : vector<1x128xf32> to vector<16x128xf32>
    %6 = arith.addf %3, %5 : vector<16x128xf32>
    %cst_5 = arith.constant 5.000000e-01 : f32
    %7 = vector.broadcast %cst_5 : f32 to vector<16x128xf32>
    %8 = arith.mulf %7, %6 : vector<16x128xf32>
    %cst_6 = arith.constant 0.707106769 : f32
    %9 = vector.broadcast %cst_6 : f32 to vector<16x128xf32>
    %10 = arith.mulf %6, %9 : vector<16x128xf32>
    %11 = math.erf %10 : vector<16x128xf32>
    %cst_7 = arith.constant 1.000000e+00 : f32
    %12 = vector.broadcast %cst_7 : f32 to vector<16x128xf32>
    %13 = arith.addf %12, %11 : vector<16x128xf32>
    %14 = arith.mulf %8, %13 : vector<16x128xf32>
    %15 = arith.truncf %14 : vector<16x128xf32> to vector<16x128xbf16>
    %c0_8 = arith.constant 0 : index
    %c0_9 = arith.constant 0 : index
    %16 = vector.load %arg4[%c0_8, %c0_9] : memref<128x32xbf16, #tpu.memory_space<vmem>>, vector<128x32xbf16>
    %cst_10 = arith.constant dense<0.000000e+00> : vector<16x32xf32>
    %17 = tpu.matmul %15, %16, %cst_10 {dimension_numbers = #tpu.dot_dimension_numbers<[1], [0], [0], [1], [0, 0, 1, 1], [], []>} : vector<16x128xbf16>, vector<128x32xbf16>, vector<16x32xf32> -> vector<16x32xf32>
    %c0_11 = arith.constant 0 : index
    %c0_12 = arith.constant 0 : index
    %18 = vector.load %arg5[%c0_11, %c0_12] : memref<1x32xf32, #tpu.memory_space<vmem>>, vector<1x32xf32>
    %19 = vector.broadcast %18 : vector<1x32xf32> to vector<16x32xf32>
    %20 = arith.addf %17, %19 : vector<16x32xf32>
    %c0_13 = arith.constant 0 : index
    %c0_14 = arith.constant 0 : index
    %21 = vector.load %arg6[%c0_13, %c0_14] : memref<16x32xf32, #tpu.memory_space<vmem>>, vector<16x32xf32>
    tpu.vector_store %arg6[%c0_13, %c0_14], %20 {strides = array<i32>} : memref<16x32xf32, #tpu.memory_space<vmem>>, vector<16x32xf32>,
    return
  }
  func.func @transform_0(%arg0: i32) -> (i32, i32) {
    %c0_i32 = arith.constant 0 : i32
    %c0_i32_0 = arith.constant 0 : i32
    return %arg0, %c0_i32 : i32, i32
  }
  func.func @transform_1(%arg0: i32) -> (i32, i32) {
    %c0_i32 = arith.constant 0 : i32
    %c0_i32_0 = arith.constant 0 : i32
    %c0_i32_1 = arith.constant 0 : i32
    return %c0_i32, %c0_i32_0 : i32, i32
  }
  func.func @transform_2(%arg0: i32) -> (i32, i32) {
    %c0_i32 = arith.constant 0 : i32
    %c0_i32_0 = arith.constant 0 : i32
    %c0_i32_1 = arith.constant 0 : i32
    return %c0_i32, %c0_i32_0 : i32, i32
  }
  func.func @transform_3(%arg0: i32) -> (i32, i32) {
    %c0_i32 = arith.constant 0 : i32
    %c0_i32_0 = arith.constant 0 : i32
    %c0_i32_1 = arith.constant 0 : i32
    return %c0_i32, %c0_i32_0 : i32, i32
  }
  func.func @transform_4(%arg0: i32) -> (i32, i32) {
    %c0_i32 = arith.constant 0 : i32
    %c0_i32_0 = arith.constant 0 : i32
    %c0_i32_1 = arith.constant 0 : i32
    return %c0_i32, %c0_i32_0 : i32, i32
  }
  func.func @transform_5(%arg0: i32) -> (i32, i32) {
    %c0_i32 = arith.constant 0 : i32
    %c0_i32_0 = arith.constant 0 : i32
    return %arg0, %c0_i32 : i32, i32
  }
}

</mosaic_0001>

<llo_original>
// kernel: adapter_eraser_forward.1
$region0: #{adapter_eraser_forward.1}
  #allocation0 [shape = 'u32[]', space=smem, size = 0x4, offset = 0x4, fixed_abs, tag = 'smem constant byte address 0x4 - core index']
  #allocation1 [shape = 'u32[144,128]{1,0:T(1,128)}', space=vmem, size = 0x12000, scoped, tag = 'internal scratch']
  %s0 = inlined_call_operand.vmem [shape: f32[16,32], index: 0, kind: input, shape index: {}]
  %s1 = inlined_call_operand.vmem [shape: bf16[32,128], index: 1, kind: input, shape index: {}]
  %s2 = inlined_call_operand.vmem [shape: f32[1,128], index: 2, kind: input, shape index: {}]
  %s3 = inlined_call_operand.vmem [shape: bf16[128,32], index: 3, kind: input, shape index: {}]
  %s4 = inlined_call_operand.vmem [shape: f32[1,32], index: 4, kind: input, shape index: {}]
  %s5 = inlined_call_operand.hbm [shape: f32[16,32], index: 5, kind: output, shape index: {}]
  %s6 = sld [smem:[#allocation0]]
  $region30: #{adapter_eraser_forward.1} parent=0
    _
  %s8 = ssub.s32 1, %s6
  %s9 = scalar_select 0, %s8, %s6
  $region1: #{adapter_eraser_forward.1} parent=0
    #allocation2 [shape = 'u8[8192]{0}', space=vmem, size = 0x2000, scoped, tag = 'output window, operand 0, single buffered']
    #allocation3 [shape = 's32[1]{0}', space=sflag, size = 0x4, scoped, tag = 'scoped memory for adapter_eraser_forward.1']
    %10 = vsyncpa [#allocation3], 0
    // Predicated region
    $region2: #{adapter_eraser_forward.1} parent=1 // pred_check
      _
    $region3: #{adapter_eraser_forward.1} parent=1 // pred_check_branch
      %12 = sbr.rel (0) target = $region5
    $region4: #{adapter_eraser_forward.1} parent=1 // pred_region
      _
    $region5: #{adapter_eraser_forward.1} parent=1 // pred_fallthru
      _
    // Predicated region
    $region6: #{adapter_eraser_forward.1} parent=1 // pred_check
      _
    $region7: #{adapter_eraser_forward.1} parent=1 // pred_check_branch
      %14 = sbr.rel (0) target = $region9
    $region8: #{adapter_eraser_forward.1} parent=1 // pred_region
      _
    $region9: #{adapter_eraser_forward.1} parent=1 // pred_fallthru
      _
    // Predicated region
    $region10: #{adapter_eraser_forward.1} parent=1 // pred_check
      _
    $region11: #{adapter_eraser_forward.1} parent=1 // pred_check_branch
      %16 = sbr.rel (0) target = $region13
    $region12: #{adapter_eraser_forward.1} parent=1 // pred_region
      _
    $region13: #{adapter_eraser_forward.1} parent=1 // pred_fallthru
      _
    // Predicated region
    $region14: #{adapter_eraser_forward.1} parent=1 // pred_check
      _
    $region15: #{adapter_eraser_forward.1} parent=1 // pred_check_branch
      %18 = sbr.rel (0) target = $region17
    $region16: #{adapter_eraser_forward.1} parent=1 // pred_region
      _
    $region17: #{adapter_eraser_forward.1} parent=1 // pred_fallthru
      _
    // Predicated region
    $region18: #{adapter_eraser_forward.1} parent=1 // pred_check
      _
    $region19: #{adapter_eraser_forward.1} parent=1 // pred_check_branch
      %20 = sbr.rel (0) target = $region21
    $region20: #{adapter_eraser_forward.1} parent=1 // pred_region
      _
    $region21: #{adapter_eraser_forward.1} parent=1 // pred_fallthru
      _
    %v22 = vld [vmem:[%s0] sm:$0xff]
    %v23 = vld [vmem:[%s0 + $0x8] sm:$0xff]
    %v24 = vpack.c.bf16 %v23, %v22
    %v25 = vld [vmem:[%s1] sm:$0xf]
    %v26 = vld [vmem:[%s1 + $0x4] sm:$0xf]
    %v27 = vld [vmem:[%s1 + $0x8] sm:$0xf]
    %v28 = vld [vmem:[%s1 + $0xc] sm:$0xf]
    %v29 = vld [vmem:[%s2] sm:$0x1]
    %v31 = vlaneseq
    %v32 = vshrl.u32 %v31, 7
    %v33 = vsub.s32 0, %v32
    %v34 = vrot.slane %v29, %v33
    %v40 = vunpack.c.l.b16 %v25
    %v41 = vunpack.c.l.b16 %v26
    %v42 = vunpack.c.l.b16 %v27
    %v43 = vunpack.c.l.b16 %v28
    %v44 = vpack.c.b16 %v41, %v40
    %v45 = vpack.c.b16 %v43, %v42
    %vm48 = vcmask 261120
    %v50 = vsel %vm48, %v24, 0
    %52 = vmatprep.subr.bf16.mxu0 0
    %53 = vmatpush1.bf16.msra.mxu0 0
    %54 = vmatprep.subr.bf16.mxu0 0
    %55 = vmatpush1.bf16.msra.mxu0 0
    %56 = vmatprep.subr.bf16.mxu0 0
    %57 = vmatpush1.bf16.msra.mxu0 0
    %58 = vmatprep.subr.bf16.mxu0 0
    %59 = vmatpush1.bf16.msra.mxu0 0
    %60 = vmatprep.subr.bf16.mxu0 0
    %61 = vmatpush1.bf16.msra.mxu0 0
    %62 = vmatprep.subr.bf16.mxu0 0
    %63 = vmatpush1.bf16.msra.mxu0 0
    %64 = vmatprep.subr.bf16.mxu0 0
    %65 = vmatpush1.bf16.msra.mxu0 %v45
    %66 = vmatprep.subr.bf16.mxu0 0
    %67 = vmatpush1.bf16.msra.mxu0 %v44
    %68 = vmatprep.subr.bf16.mxu0 0
    %69 = vmatpush2.bf16.msra.mxu0 0
    %70 = vmatprep.subr.bf16.mxu0 0
    %71 = vmatpush2.bf16.msra.mxu0 0
    %72 = vmatprep.subr.bf16.mxu0 0
    %73 = vmatpush2.bf16.msra.mxu0 0
    %74 = vmatprep.subr.bf16.mxu0 0
    %75 = vmatpush2.bf16.msra.mxu0 0
    %76 = vmatprep.subr.bf16.mxu0 0
    %77 = vmatpush2.bf16.msra.mxu0 0
    %78 = vmatprep.subr.bf16.mxu0 0
    %79 = vmatpush2.bf16.msra.mxu0 0
    %80 = vmatprep.subr.bf16.mxu0 0
    %81 = vmatpush2.bf16.msra.mxu0 0
    %82 = vmatprep.subr.bf16.mxu0 0
    %83 = vmatpush2.bf16.msra.mxu0 0
    %84 = vmatprep.mubr.bf16.mxu0 0
    %85 = vmatmul.mubr.bf16.gmra.mxu0 %v50
    %v86 = vpop.f32.mrf.mxu0
    %v87 = vadd.f32 %v34, %v86
    %v88 = vpop.f32.mrf.mxu0
    %v89 = vpop.f32.mrf.mxu0
    %v90 = vadd.f32 %v34, %v89
    %v91 = vpop.f32.mrf.mxu0
    %92 = vdwg.mxu0
    %v93 = vmul.f32 %v87, 0.5
    %v94 = vmul.f32 %v90, 0.5
    %v95 = vmul.f32 %v87, 0.70710677
    %v96 = vmul.f32 %v90, 0.70710677
    %v97 = verf.f32.pop %v95
    %v98 = verf.f32.pop %v96
    %v99 = vadd.f32 %v97, 1.0
    %v100 = vadd.f32 %v98, 1.0
    %v101 = vmul.f32 %v93, %v99
    %v102 = vmul.f32 %v94, %v100
    %v103 = vpack.c.bf16 %v102, %v101
    %v104 = vld [vmem:[%s3] sm:$0xf]
    %v105 = vld [vmem:[%s3 + $0x4] sm:$0xf]
    %v106 = vld [vmem:[%s3 + $0x8] sm:$0xf]
    %v107 = vld [vmem:[%s3 + $0xc] sm:$0xf]
    %v108 = vld [vmem:[%s3 + $0x10] sm:$0xf]
    %v109 = vld [vmem:[%s3 + $0x14] sm:$0xf]
    %v110 = vld [vmem:[%s3 + $0x18] sm:$0xf]
    %v111 = vld [vmem:[%s3 + $0x1c] sm:$0xf]
    %v112 = vld [vmem:[%s3 + $0x20] sm:$0xf]
    %v113 = vld [vmem:[%s3 + $0x24] sm:$0xf]
    %v114 = vld [vmem:[%s3 + $0x28] sm:$0xf]
    %v115 = vld [vmem:[%s3 + $0x2c] sm:$0xf]
    %v116 = vld [vmem:[%s3 + $0x30] sm:$0xf]
    %v117 = vld [vmem:[%s3 + $0x34] sm:$0xf]
    %v118 = vld [vmem:[%s3 + $0x38] sm:$0xf]
    %v119 = vld [vmem:[%s3 + $0x3c] sm:$0xf]
    %v120 = vld [vmem:[%s4] sm:$0x1]
    %v122 = vlaneseq
    %v123 = vshrl.u32 %v122, 7
    %v124 = vsub.s32 0, %v123
    %v125 = vrot.slane %v120, %v124
    %v143 = vunpack.c.l.b16 %v104
    %v144 = vunpack.c.l.b16 %v105
    %v145 = vunpack.c.l.b16 %v106
    %v146 = vunpack.c.l.b16 %v107
    %v147 = vunpack.c.l.b16 %v108
    %v148 = vunpack.c.l.b16 %v109
    %v149 = vunpack.c.l.b16 %v110
    %v150 = vunpack.c.l.b16 %v111
    %v151 = vunpack.c.l.b16 %v112
    %v152 = vunpack.c.l.b16 %v113
    %v153 = vunpack.c.l.b16 %v114
    %v154 = vunpack.c.l.b16 %v115
    %v155 = vunpack.c.l.b16 %v116
    %v156 = vunpack.c.l.b16 %v117
    %v157 = vunpack.c.l.b16 %v118
    %v158 = vunpack.c.l.b16 %v119
    %v159 = vpack.c.b16 %v144, %v143
    %v160 = vpack.c.b16 %v146, %v145
    %v161 = vpack.c.b16 %v148, %v147
    %v162 = vpack.c.b16 %v150, %v149
    %v163 = vpack.c.b16 %v152, %v151
    %v164 = vpack.c.b16 %v154, %v153
    %v165 = vpack.c.b16 %v156, %v155
    %v166 = vpack.c.b16 %v158, %v157
    %175 = vmatprep.subr.bf16.mxu0 0
    %176 = vmatpush1.bf16.msra.mxu0 %v166
    %177 = vmatprep.subr.bf16.mxu0 0
    %178 = vmatpush1.bf16.msra.mxu0 %v165
    %179 = vmatprep.subr.bf16.mxu0 0
    %180 = vmatpush1.bf16.msra.mxu0 %v164
    %181 = vmatprep.subr.bf16.mxu0 0
    %182 = vmatpush1.bf16.msra.mxu0 %v163
    %183 = vmatprep.subr.bf16.mxu0 0
    %184 = vmatpush1.bf16.msra.mxu0 %v162
    %185 = vmatprep.subr.bf16.mxu0 0
    %186 = vmatpush1.bf16.msra.mxu0 %v161
    %187 = vmatprep.subr.bf16.mxu0 0
    %188 = vmatpush1.bf16.msra.mxu0 %v160
    %189 = vmatprep.subr.bf16.mxu0 0
    %190 = vmatpush1.bf16.msra.mxu0 %v159
    %191 = vmatprep.subr.bf16.mxu0 0
    %192 = vmatpush2.bf16.msra.mxu0 0
    %193 = vmatprep.subr.bf16.mxu0 0
    %194 = vmatpush2.bf16.msra.mxu0 0
    %195 = vmatprep.subr.bf16.mxu0 0
    %196 = vmatpush2.bf16.msra.mxu0 0
    %197 = vmatprep.subr.bf16.mxu0 0
    %198 = vmatpush2.bf16.msra.mxu0 0
    %199 = vmatprep.subr.bf16.mxu0 0
    %200 = vmatpush2.bf16.msra.mxu0 0
    %201 = vmatprep.subr.bf16.mxu0 0
    %202 = vmatpush2.bf16.msra.mxu0 0
    %203 = vmatprep.subr.bf16.mxu0 0
    %204 = vmatpush2.bf16.msra.mxu0 0
    %205 = vmatprep.subr.bf16.mxu0 0
    %206 = vmatpush2.bf16.msra.mxu0 0
    %207 = vmatprep.mubr.bf16.mxu0 0
    %208 = vmatmul.mubr.bf16.gmra.mxu0 %v103
    %v209 = vpop.f32.mrf.mxu0
    %v210 = vadd.f32 %v125, %v209
    %v211 = vpop.f32.mrf.mxu0
    %v212 = vpop.f32.mrf.mxu0
    %v213 = vadd.f32 %v125, %v212
    %v214 = vpop.f32.mrf.mxu0
    %215 = vdwg.mxu0
    %216 = vst.msk [vmem:[#allocation2] sm:$0xff] %vm48, %v210
    %217 = vst.msk [vmem:[#allocation2 + $0x8] sm:$0xff] %vm48, %v213
    // Predicated region
    $region22: #{adapter_eraser_forward.1} parent=1 // pred_check
      _
    $region23: #{adapter_eraser_forward.1} parent=1 // pred_check_branch
      %219 = sbr.rel (0) target = $region25
    $region24: #{adapter_eraser_forward.1} parent=1 // pred_region
      %s221 = ssub.s32 256, 256
      %222 = vsyncadd [#allocation3], %s221
      %s223 = sshll.u32 [#allocation2], 4
      %s224 = int_to_ptr.vmem [resolvable:$true] %s223
      %229 = dma.vmem_to_hbm [thread:$0]  %s224, 256, %s5, [#allocation3], 128, 128, 8
    $region25: #{adapter_eraser_forward.1} parent=1 // pred_fallthru
      _
    // Predicated region
    $region26: #{adapter_eraser_forward.1} parent=1 // pred_check
      _
    $region27: #{adapter_eraser_forward.1} parent=1 // pred_check_branch
      %231 = sbr.rel (0) target = $region29
    $region28: #{adapter_eraser_forward.1} parent=1 // pred_region
      %232 = dma.done [#allocation3], 256
    $region29: #{adapter_eraser_forward.1} parent=1 // pred_fallthru
      _
    %233 = vsyncpa [#allocation3], 1

</llo_original>
